<compile_context>
chip_gen: v6e
topology: v6e:2x2x1
jax: 0.10.0
libtpu: 0.0.40
codegen_flags: <defaults>
</compile_context>

<pallas_src>
import functools
import math

import jax
import jax.numpy as jnp
import numpy as np
from jax import lax
from jax.experimental import pallas as pl
from jax.experimental.pallas import tpu as pltpu


def _round_up(x, m):
    return ((x + m - 1) // m) * m


# ----------------------- roll-convention guard (one-time) -------------------
_ROLL_MATCHES_NUMPY = None


def _roll_matches_numpy() -> bool:
    """True iff pltpu.roll follows the np.roll convention (out[i] = x[i - shift]).

    One tiny probe kernel, compiled exactly once per process (hoisted to module
    construction, never on the per-call path).  The f32 reference assert in main
    additionally guards against a wrong cached sign.
    """
    global _ROLL_MATCHES_NUMPY
    if _ROLL_MATCHES_NUMPY is None:
        x = jnp.arange(8 * 128, dtype=jnp.float32).reshape(8, 128)

        def probe(x_ref, o_ref):
            o_ref[...] = pltpu.roll(x_ref[...], 1, axis=1)

        y = pl.pallas_call(
            probe, out_shape=jax.ShapeDtypeStruct((8, 128), jnp.float32))(x)
        _ROLL_MATCHES_NUMPY = bool(float(y[0, 1]) == 0.0)
    return _ROLL_MATCHES_NUMPY


def _tensorcores_per_chip() -> int:
    """2 for v7x (2 TensorCores / chip), 1 for v2..v6e (and unknown backends)."""
    try:
        kind = jax.devices()[0].device_kind.lower().replace(" ", "")
    except Exception:
        return 1
    return 2 if ("v7" in kind or "7x" in kind) else 1


# ----------------------------- Pallas kernel -------------------------------
def _residual_bcos_kernel(z_ref, w1_ref, w2_ref, mask_ref, o_ref, taps_ref, *,
                          tap_shifts, out_c, in_c, cp8, oc8):
    """Fused residual block for one image group (G images concatenated on lanes).

    z_ref   : (1, C, GL)       zero-padded input, channel-major, flat spatial (lanes)
    w1_ref  : (M, ks*ks*cp8)   fused layer-1 weights (1/scale folded in); row blocks:
                               [0,oc8) maxout branch a, [oc8,2*oc8) branch b,
                               row 2*oc8 = pooled sum_C x^2 (unit weights)
    w2_ref  : (M, ks*ks*cp8)   fused layer-2 weights
    mask_ref: (1, GL)          1.0 at valid interior positions, else 0.0
    o_ref   : (1, out_c, GL)   output (lane-dense; GL is a multiple of 128)
    taps_ref: (ks*ks*cp8, GL)  VMEM staging buffer for the rolled taps (f32 or bf16)
    """
    z = z_ref[0]                       # (C, GL); border/tail positions hold zeros
    mask = mask_ref[...]               # (1, GL)
    mm_dtype = taps_ref.dtype
    C = in_c

    def bcos_layer(x, w_ref):
        # x: (C, GL) f32, exact zeros at padded-border / tail positions.
        GL = x.shape[1]
        # Norm folded into the matmul: one squared-channel-sum row per tap.
        s0 = jnp.sum(x * x, axis=0, keepdims=True)            # (1, GL), once per layer
        for t, shift in enumerate(tap_shifts):
            # Align x[p + tap_offset] with output position p via XLU lane rolls;
            # wrap-around only lands on masked border/tail positions.
            xt = x if shift == 0 else pltpu.roll(x, shift, axis=1)
            st = s0 if shift == 0 else pltpu.roll(s0, shift, axis=1)
            base = t * cp8
            taps_ref[base:base + C, :] = xt.astype(mm_dtype)
            # Fill the remaining rows of the tap block with copies of the rolled s0
            # row: row C carries the norm (unit weight); the rest are dead (zero
            # weight) but writing them keeps the stores sublane-aligned and the
            # scratch free of uninitialised (potentially NaN) data.
            taps_ref[base + C:base + cp8, :] = jnp.broadcast_to(
                st, (cp8 - C, GL)).astype(mm_dtype)
        # ONE fused matmul per layer: (2*oc8+8, K) @ (K, GL), K = ks*ks*cp8,
        # f32 accumulation regardless of operand dtype.
        acc = jnp.dot(w_ref[...], taps_ref[...],
                      preferred_element_type=jnp.float32)
        # maxout(2): branches live in separate 8-sublane-aligned row groups.
        out = jnp.maximum(acc[:out_c, :], acc[oc8:oc8 + out_c, :])
        inv_norm = lax.rsqrt(acc[2 * oc8:2 * oc8 + 1, :] + 1e-6)   # EUP, no divide
        return out * jnp.abs(out) * inv_norm                        # B-cos, b = 2

    y1 = bcos_layer(z, w1_ref) * mask      # mask -> exact zero padding for layer 2
    y2 = bcos_layer(y1, w2_ref)
    o_ref[0] = (y2 + z) * mask             # residual add (in_c == out_c), one store


def _fused_residual_block(z, w1f, w2f, mask, *, tap_shifts, out_c, in_c, cp8, oc8,
                          mm_dtype):
    NG, C, GL = z.shape
    n_taps = len(tap_shifts)
    M, K = w1f.shape
    kernel = functools.partial(_residual_bcos_kernel,
                               tap_shifts=tuple(tap_shifts), out_c=out_c,
                               in_c=in_c, cp8=cp8, oc8=oc8)
    return pl.pallas_call(
        kernel,
        out_shape=jax.ShapeDtypeStruct((NG, out_c, GL), jnp.float32),
        grid=(NG,),
        in_specs=[
            pl.BlockSpec((1, C, GL), lambda n: (n, 0, 0)),      # image-group input
            pl.BlockSpec((M, K), lambda n: (0, 0)),             # fused weights L1
            pl.BlockSpec((M, K), lambda n: (0, 0)),             # fused weights L2
            pl.BlockSpec((1, GL), lambda n: (0, 0)),            # interior mask
        ],
        out_specs=pl.BlockSpec((1, out_c, GL), lambda n: (n, 0, 0)),
        scratch_shapes=[pltpu.VMEM((n_taps * cp8, GL), mm_dtype)],  # tap staging
        compiler_params=pltpu.CompilerParams(
            dimension_semantics=("parallel",),      # v7x: both TCs when NG >= 2
            vmem_limit_bytes=32 * 1024 * 1024),
    )(z, w1f, w2f, mask)


# ------------------------------- wrapper ------------------------------------
class ResidualBlockPallas:
    """Pallas port of residualBlock(in_c, out_c, ks, s, p) with BcosConv2d layers."""

    def __init__(self, in_c, out_c, ks=3, s=1, p=1, max_out=2,
                 matmul_dtype=jnp.bfloat16, key=jax.random.PRNGKey(42)):
        assert in_c == out_c, "residual add requires in_c == out_c"
        assert s == 1 and 2 * p == ks - 1, "fused kernel assumes 'same' geometry"
        self.in_c, self.out_c = in_c, out_c
        self.ks, self.s, self.p, self.max_out = ks, s, p, max_out
        self.matmul_dtype = np.dtype(matmul_dtype)
        self.cp8 = _round_up(in_c + 1, 8)   # rows per tap block (C channels + s0, padded)
        self.oc8 = _round_up(out_c, 8)      # 8-sublane-aligned maxout branch blocks

        k1, k2 = jax.random.split(key)
        # deterministic synthetic weights (Conv2d OIHW layout, bias=False)
        self.w1 = 0.1 * jax.random.normal(k1, (out_c * max_out, in_c, ks, ks),
                                          jnp.float32)
        self.w2 = 0.1 * jax.random.normal(k2, (out_c * max_out, in_c, ks, ks),
                                          jnp.float32)
        self.scale = math.sqrt(ks * ks * in_c) / 100.0
        self.inv_scale = 1.0 / self.scale

        # Fused per-layer weight matrices, built once (hoisted out of __call__).
        self.w1_fused = self._prep_weights(self.w1)
        self.w2_fused = self._prep_weights(self.w2)

        # Roll-convention probe: once per process, never on the per-call path.
        self._roll_sign = -1 if _roll_matches_numpy() else 1
        self._fwd_cache = {}                # shape-keyed cache of jitted forwards

    def _prep_weights(self, w):
        """(out_c*2, C, ks, ks) OIHW conv weights -> fused (2*oc8+8, ks*ks*cp8)."""
        out_c, C, ks = self.out_c, self.in_c, self.ks
        cp8, oc8 = self.cp8, self.oc8
        n_taps = ks * ks
        M = 2 * oc8 + 8
        ws = np.asarray(w, np.float32) * self.inv_scale   # fold 1/scale (maxout-safe)
        wa = ws[0::2].transpose(2, 3, 0, 1).reshape(n_taps, out_c, C)   # branch a
        wb = ws[1::2].transpose(2, 3, 0, 1).reshape(n_taps, out_c, C)   # branch b
        wf = np.zeros((M, n_taps * cp8), np.float32)
        for t in range(n_taps):
            col = t * cp8
            wf[0:out_c, col:col + C] = wa[t]            # rows [0, oc8): branch a
            wf[oc8:oc8 + out_c, col:col + C] = wb[t]    # rows [oc8, 2*oc8): branch b
            wf[2 * oc8, col + C] = 1.0                  # row 2*oc8: pooled sum_C x^2
        return jnp.asarray(wf, dtype=self.matmul_dtype)

    def _build_forward(self, shape):
        N, C, H, W = shape
        assert C == self.in_c
        p, ks = self.p, self.ks
        Hp, Wp = H + 2 * p, W + 2 * p
        Lraw = Hp * Wp
        L = _round_up(Lraw, 128)                  # lane-dense per-image flat length

        # ---- generation-aware image grouping (images concatenated on lanes) ----
        itemsize = self.matmul_dtype.itemsize
        per_image_bytes = L * (ks * ks * self.cp8 * itemsize + 64 * 4)
        max_g = max(1, int((16 * 2 ** 20) // per_image_bytes))     # VMEM budget
        # v7x: keep >= 2 parallel grid steps (both TensorCores); v5e/v6e: 1 step.
        target_steps = 2 if (_tensorcores_per_chip() >= 2 and N >= 2) else 1
        g_cap = min(max_g, max(1, N // target_steps))
        G = 1
        for cand in range(1, N + 1):
            if N % cand == 0 and cand <= g_cap:
                G = cand
        NG, GL = N // G, G * L

        # ---- static per-shape constants (hoisted out of the per-call path) ----
        idx = np.arange(L)
        ii, jj = idx // Wp, idx % Wp
        m = ((idx < Lraw) & (ii >= p) & (ii < Hp - p) & (jj >= p) & (jj < Wp - p))
        mask = jnp.asarray(np.tile(m.astype(np.float32), G).reshape(1, GL))
        # tap offsets in flat padded coords, (kh, kw) order matching the weights
        taps = [(dh - p) * Wp + (dw - p) for dh in range(ks) for dw in range(ks)]
        tap_shifts = tuple((self._roll_sign * off) % GL for off in taps)

        w1f, w2f = self.w1_fused, self.w2_fused
        out_c, in_c, cp8, oc8 = self.out_c, self.in_c, self.cp8, self.oc8
        mm_dtype = self.matmul_dtype

        def fwd(x_nchw):
            x = x_nchw.astype(jnp.float32)
            # zero-padded, channel-major, flat-spatial layout, G images on lanes
            z = jnp.pad(x, ((0, 0), (0, 0), (p, p), (p, p))).reshape(N, C, Lraw)
            z = jnp.pad(z, ((0, 0), (0, 0), (0, L - Lraw)))
            z = z.reshape(NG, G, C, L).transpose(0, 2, 1, 3).reshape(NG, C, GL)
            out = _fused_residual_block(
                z, w1f, w2f, mask, tap_shifts=tap_shifts, out_c=out_c, in_c=in_c,
                cp8=cp8, oc8=oc8, mm_dtype=mm_dtype)
            # (NG, out_c, G*L) -> (N, out_c, L) -> strip padding -> NCHW crop
            out = out.reshape(NG, out_c, G, L).transpose(0, 2, 1, 3)
            out = out.reshape(N, out_c, L)[:, :, :Lraw]
            return out.reshape(N, out_c, Hp, Wp)[:, :, p:p + H, p:p + W]

        return jax.jit(fwd)     # one dispatch per call, plan cached per shape

    def __call__(self, x_nchw):
        fwd = self._fwd_cache.get(x_nchw.shape)
        if fwd is None:
            fwd = self._build_forward(x_nchw.shape)
            self._fwd_cache[x_nchw.shape] = fwd
        return fwd(x_nchw)


# ------------------------- pure-JAX reference ------------------------------
def _bcos_conv2d_ref(x, w, ks, s, p, scale, max_out=2):
    out = lax.conv_general_dilated(x, w, (s, s), [(p, p), (p, p)],
                                   dimension_numbers=('NCHW', 'OIHW', 'NCHW'))
    N, Cf, Ho, Wo = out.shape
    out = out.reshape(N, Cf // max_out, max_out, Ho, Wo).max(axis=2) / scale
    sq = (x ** 2).sum(axis=1, keepdims=True)
    norm = lax.reduce_window(sq, 0.0, lax.add, (1, 1, ks, ks), (1, 1, s, s),
                             [(0, 0), (0, 0), (p, p), (p, p)])
    norm = jnp.sqrt(norm + 1e-6)
    return out * jnp.abs(out) / norm


def _residual_block_ref(x, blk):
    y = _bcos_conv2d_ref(x, blk.w1, blk.ks, blk.s, blk.p, blk.scale)
    y = _bcos_conv2d_ref(y, blk.w2, blk.ks, blk.s, blk.p, blk.scale)
    return y + x


# --------------------------------- main -------------------------------------
if __name__ == "__main__":
    key = jax.random.PRNGKey(0)
    x = jax.random.normal(key, (2, 4, 16, 16), jnp.float32)   # NCHW, in_c=out_c=4

    # f32-operand path: identical B-cos math, tight elementwise reference check.
    blk_f32 = ResidualBlockPallas(in_c=4, out_c=4, ks=3, s=1, p=1,
                                  matmul_dtype=jnp.float32)
    y_f32 = jax.block_until_ready(blk_f32(x))
    y_ref = _residual_block_ref(x, blk_f32)
    assert y_f32.shape == x.shape and y_f32.dtype == jnp.float32
    assert jnp.allclose(y_f32, y_ref, rtol=5e-2, atol=5e-2), "f32 path mismatch"

    # bf16-operand path (default perf config): same weights, MXU-native operands,
    # f32 accumulation.  out*|out| across two layers amplifies bf16 rounding at
    # cancellation positions, so validate with a relative-L2 criterion.
    blk_bf16 = ResidualBlockPallas(in_c=4, out_c=4, ks=3, s=1, p=1,
                                   matmul_dtype=jnp.bfloat16)
    y_bf16 = jax.block_until_ready(blk_bf16(x))
    assert y_bf16.shape == x.shape
    rel_l2 = jnp.linalg.norm(y_bf16 - y_ref) / jnp.linalg.norm(y_ref)
    assert float(rel_l2) < 5e-2, f"bf16 path rel-L2 too large: {float(rel_l2)}"

    print("KERNEL_OK")
</pallas_src>

<mosaic_0001>
module attributes {stable_mosaic.version = 11 : i64} {
  func.func @probe(%arg0: memref<8x128xf32, #tpu.memory_space<vmem>>, %arg1: memref<8x128xf32, #tpu.memory_space<vmem>>) attributes {dimension_semantics = [], scalar_prefetch = 0 : i64, scratch_operands = 0 : i64, tpu.core_type = #tpu.core_type<tc>} {
    %c0 = arith.constant 0 : index
    %c0_0 = arith.constant 0 : index
    %0 = vector.load %arg0[%c0, %c0_0] : memref<8x128xf32, #tpu.memory_space<vmem>>, vector<8x128xf32>
    %c1_i32 = arith.constant 1 : i32
    %1 = tpu.dynamic_rotate %0 by %c1_i32 dim 1 : vector<8x128xf32>, i32 -> vector<8x128xf32>
    %c0_1 = arith.constant 0 : index
    %c0_2 = arith.constant 0 : index
    %2 = vector.load %arg1[%c0_1, %c0_2] : memref<8x128xf32, #tpu.memory_space<vmem>>, vector<8x128xf32>
    tpu.vector_store %arg1[%c0_1, %c0_2], %1 {strides = array<i32>} : memref<8x128xf32, #tpu.memory_space<vmem>>, vector<8x128xf32>,
    return
  }
}

</mosaic_0001>

<llo_original>
// kernel: tpu_custom_call.1
$region0: #{tpu_custom_call.1}
  #allocation0 [shape = 'u32[]', space=smem, size = 0x4, offset = 0x4, fixed_abs, tag = 'smem constant byte address 0x4 - core index']
  #allocation1 [shape = 'u32[144,128]{1,0:T(1,128)}', space=vmem, size = 0x12000, scoped, tag = 'internal scratch']
  %s0 = inlined_call_operand.hbm [shape: f32[8,128], index: 0, kind: input, shape index: {}]
  %s1 = inlined_call_operand.hbm [shape: f32[8,128], index: 1, kind: output, shape index: {}]
  %s2 = sld [smem:[#allocation0]]
  $region18: #{tpu_custom_call.1} parent=0
    _
  %s4 = ssub.s32 1, %s2
  %s5 = scalar_select 0, %s4, %s2
  $region1: #{tpu_custom_call.1} parent=0
    #allocation2 [shape = 'u8[4096]{0}', space=vmem, size = 0x1000, scoped, tag = 'input window, operand 0, single buffered']
    #allocation3 [shape = 's32[1]{0}', space=sflag, size = 0x4, scoped, tag = 'scoped memory for tpu_custom_call.1']
    #allocation4 [shape = 's32[1]{0}', space=sflag, size = 0x4, scoped, tag = 'scoped memory for tpu_custom_call.1']
    #allocation5 [shape = 'u8[4096]{0}', space=vmem, size = 0x1000, scoped, tag = 'output window, operand 0, single buffered']
    %6 = vsyncpa [#allocation3], 0
    %7 = vsyncpa [#allocation4], 0
    // Predicated region
    $region2: #{tpu_custom_call.1} parent=1 // pred_check
      _
    $region3: #{tpu_custom_call.1} parent=1 // pred_check_branch
      %9 = sbr.rel (0) target = $region5
    $region4: #{tpu_custom_call.1} parent=1 // pred_region
      %s11 = ssub.s32 128, 128
      %12 = vsyncadd [#allocation3], %s11
      %s14 = sshll.u32 [#allocation2], 4
      %s15 = int_to_ptr.vmem [resolvable:$true] %s14
      %17 = dma.hbm_to_vmem [thread:$0]  %s0, 128, %s15, [#allocation3]
    $region5: #{tpu_custom_call.1} parent=1 // pred_fallthru
      _
    // Predicated region
    $region6: #{tpu_custom_call.1} parent=1 // pred_check
      _
    $region7: #{tpu_custom_call.1} parent=1 // pred_check_branch
      %19 = sbr.rel (0) target = $region9
    $region8: #{tpu_custom_call.1} parent=1 // pred_region
      %20 = dma.done [#allocation3], 128
    $region9: #{tpu_custom_call.1} parent=1 // pred_fallthru
      _
    %v21 = vld [vmem:[#allocation2] sm:$0xff]
    %22 = vrot.lane.b32.xlu0 %v21, 1
    %v23 = vpop.permute.xlu0 %22
    %24 = vst [vmem:[#allocation5] sm:$0xff] %v23
    // Predicated region
    $region10: #{tpu_custom_call.1} parent=1 // pred_check
      _
    $region11: #{tpu_custom_call.1} parent=1 // pred_check_branch
      %26 = sbr.rel (0) target = $region13
    $region12: #{tpu_custom_call.1} parent=1 // pred_region
      %s28 = ssub.s32 128, 128
      %29 = vsyncadd [#allocation4], %s28
      %s31 = sshll.u32 [#allocation5], 4
      %s32 = int_to_ptr.vmem [resolvable:$true] %s31
      %34 = dma.vmem_to_hbm [thread:$0]  %s32, 128, %s1, [#allocation4]
    $region13: #{tpu_custom_call.1} parent=1 // pred_fallthru
      _
    // Predicated region
    $region14: #{tpu_custom_call.1} parent=1 // pred_check
      _
    $region15: #{tpu_custom_call.1} parent=1 // pred_check_branch
      %36 = sbr.rel (0) target = $region17
    $region16: #{tpu_custom_call.1} parent=1 // pred_region
      %37 = dma.done [#allocation4], 128
    $region17: #{tpu_custom_call.1} parent=1 // pred_fallthru
      _
    %38 = vsyncpa [#allocation3], 1
    %39 = vsyncpa [#allocation4], 1

</llo_original>
